<compile_context>
chip_gen: v7x
topology: tpu7x:2x2x1
jax: 0.10.0
libtpu: 0.0.40
codegen_flags: <defaults>
</compile_context>

<pallas_src>
import math

import jax
import jax.numpy as jnp
from jax import lax
from jax.experimental import pallas as pl
from jax.experimental.pallas import tpu as pltpu


# ---------------------------------------------------------------------------
# VMEM budgeting helpers
# ---------------------------------------------------------------------------
def _vmem_budget():
    """~55% of physical VMEM (v7x has only 64 MiB; leave compiler headroom)."""
    try:
        cap = int(pltpu.get_tpu_info().vmem_capacity_bytes)
    except Exception:
        cap = 64 << 20
    return max(16 << 20, int(0.55 * cap))


def _clamp_limit(estimate, budget):
    return int(min(max(estimate, 16 << 20), budget))


def _pick_row_tile(n, per_row_bytes, fixed_bytes, budget,
                   candidates=(1024, 512, 256, 128, 64, 32, 16, 8)):
    """Largest row tile that (a) divides n, (b) fits the VMEM budget with
    double buffering, and (c) leaves >= 2 grid steps so both v7x TensorCores
    get work.  Falls back to the full extent for tiny / odd n."""
    def fits(t):
        return n % t == 0 and fixed_bytes + 2 * t * per_row_bytes <= budget

    for t in candidates:                       # prefer >= 2 grid steps
        if t <= n // 2 and fits(t):
            return t
    for t in candidates:
        if t <= n and fits(t):
            return t
    return n


# ---------------------------------------------------------------------------
# Kernel 1: fused Gram + squared pairwise distances
#   d2[i, j] = |x_i|^2 + |x_j|^2 - 2 * x_i . x_j
# (the Gram matmul runs on the MXU; distances are the kernel epilogue so no
#  separate (n, n) Gram array is written to HBM)
# ---------------------------------------------------------------------------
def _dist_kernel(xi_ref, xt_ref, sq_ref, o_ref):
    xi = xi_ref[...]                                            # (TI, D)
    gram = jnp.dot(xi, xt_ref[...],
                   preferred_element_type=jnp.float32)          # (TI, N)
    sq_i = jnp.sum(xi * xi, axis=1, keepdims=True)              # (TI, 1)
    o_ref[...] = sq_i + sq_ref[...] - 2.0 * gram                # (TI, N)


def pallas_pairwise_sqdist(x):
    x = x.astype(jnp.float32)
    n, d = x.shape
    xt = jnp.transpose(x)                                       # (D, N) glue
    sq = jnp.sum(x * x, axis=1)[None, :]                        # (1, N) glue

    budget = _vmem_budget()
    fixed = 8 * (d * n + n)                                     # resident xT, sq
    per_row = 8 * (d + n) + 4 * n                               # x tile, d2 out, temps
    ti = _pick_row_tile(n, per_row, fixed, budget)
    vlim = _clamp_limit(fixed + 2 * ti * per_row + (4 << 20), budget)

    return pl.pallas_call(
        _dist_kernel,
        out_shape=jax.ShapeDtypeStruct((n, n), jnp.float32),
        grid_spec=pltpu.PrefetchScalarGridSpec(
            num_scalar_prefetch=0,
            grid=(n // ti,),
            in_specs=[
                pl.BlockSpec((ti, d), lambda i: (i, 0)),        # x row tile
                pl.BlockSpec((d, n), lambda i: (0, 0)),         # x^T, VMEM-resident
                pl.BlockSpec((1, n), lambda i: (0, 0)),         # |x_j|^2 row
            ],
            out_specs=pl.BlockSpec((ti, n), lambda i: (i, 0)),
        ),
        compiler_params=pltpu.CompilerParams(
            dimension_semantics=("parallel",),
            vmem_limit_bytes=vlim,
        ),
    )(x, xt, sq)


# ---------------------------------------------------------------------------
# Kernel 2: one fully fused AffinityKernel layer.
#   per row tile:   A = x_full @ Wn^T   (all candidate neighbours, in VMEM)
#                   B = x_tile @ Ws^T
#                   pooled[i] = (1/k) * sum_j clip(A[g[i, j]] + B[i], -1, 1)
#                   out       = pooled @ W2p^T + x_tile @ W2x^T
# Neighbour rows are gathered with per-row one-hot matmuls (exact in f32), so
# the j-reduction runs on the MXU and no dense mask / (TI,TJ,H) temp exists.
# ---------------------------------------------------------------------------
def _make_layer_kernel(k):
    inv_k = 1.0 / float(k)

    def kernel(idx_ref, xt_ref, xf_ref, wn_ref, ws_ref, w2p_ref, w2x_ref, o_ref):
        xt = xt_ref[...]                                        # (TI, D)
        xf = xf_ref[...]                                        # (N,  D)
        ti, n = xt.shape[0], xf.shape[0]
        # projections on the MXU
        a_full = jnp.dot(xf, wn_ref[...],
                         preferred_element_type=jnp.float32)    # (N, H)
        b = jnp.dot(xt, ws_ref[...],
                    preferred_element_type=jnp.float32)         # (TI, H)
        idx = idx_ref[...]                                      # (TI, K) int32
        iota = lax.broadcasted_iota(jnp.int32, (ti, n), 1)
        acc = jnp.zeros_like(b)                                 # f32 accumulator
        for j in range(k):                                      # k is small: static unroll
            onehot = (idx[:, j:j + 1] == iota).astype(jnp.float32)     # (TI, N)
            neigh = jnp.dot(onehot, a_full,
                            preferred_element_type=jnp.float32)        # (TI, H) gather
            acc = acc + jnp.clip(neigh + b, -1.0, 1.0)          # Hardtanh
        pooled = acc * inv_k                                    # average pooling
        out = (jnp.dot(pooled, w2p_ref[...], preferred_element_type=jnp.float32)
               + jnp.dot(xt, w2x_ref[...], preferred_element_type=jnp.float32))
        o_ref[...] = out

    return kernel


def affinity_kernel_forward(x, w, w2, graph_k, k):
    """One fused AffinityKernel layer (average pooling, Hardtanh, w2 head)."""
    x = x.astype(jnp.float32)
    n, in_dim = x.shape
    hidden = w.shape[0]
    out_dim = w2.shape[0]
    # split / pre-transpose the tiny weights once (layout plumbing, no compute)
    wn_t = jnp.transpose(w[:, :in_dim]).astype(jnp.float32)     # (D, H)
    ws_t = jnp.transpose(w[:, in_dim:]).astype(jnp.float32)     # (D, H)
    w2p_t = jnp.transpose(w2[:, :hidden]).astype(jnp.float32)   # (H, O)
    w2x_t = jnp.transpose(w2[:, hidden:]).astype(jnp.float32)   # (D, O)

    budget = _vmem_budget()
    fixed = (8 * (n * in_dim + 2 * in_dim * hidden + (hidden + in_dim) * out_dim)
             + 4 * n * hidden)                                  # resident blocks + A temp
    per_row = 8 * (in_dim + k + out_dim) + 4 * (3 * n + 4 * hidden)
    ti = _pick_row_tile(n, per_row, fixed, budget)
    vlim = _clamp_limit(fixed + 2 * ti * per_row + (4 << 20), budget)

    return pl.pallas_call(
        _make_layer_kernel(k),
        out_shape=jax.ShapeDtypeStruct((n, out_dim), jnp.float32),
        grid_spec=pltpu.PrefetchScalarGridSpec(
            num_scalar_prefetch=0,
            grid=(n // ti,),
            in_specs=[
                pl.BlockSpec((ti, k), lambda i: (i, 0)),            # kNN indices
                pl.BlockSpec((ti, in_dim), lambda i: (i, 0)),       # x row tile
                pl.BlockSpec((n, in_dim), lambda i: (0, 0)),        # x, VMEM-resident
                pl.BlockSpec((in_dim, hidden), lambda i: (0, 0)),   # Wn^T
                pl.BlockSpec((in_dim, hidden), lambda i: (0, 0)),   # Ws^T
                pl.BlockSpec((hidden, out_dim), lambda i: (0, 0)),  # W2 (pooled part)^T
                pl.BlockSpec((in_dim, out_dim), lambda i: (0, 0)),  # W2 (input part)^T
            ],
            out_specs=pl.BlockSpec((ti, out_dim), lambda i: (i, 0)),
        ),
        compiler_params=pltpu.CompilerParams(
            dimension_semantics=("parallel",),
            vmem_limit_bytes=vlim,
        ),
    )(graph_k, x, x, wn_t, ws_t, w2p_t, w2x_t)


# ---------------------------------------------------------------------------
# AffinityNet forward (default config) built from the fused kernels
# ---------------------------------------------------------------------------
def affinity_net_forward(x, params, ks):
    """AffinityNet forward with defaults: dense=True, forward_input=True,
    return_all=False, use_initial_graph=True, pooling='average',
    nonlinearity_1=Hardtanh, nonlinearity_2=None, interaction_only=False."""
    n = x.shape[0]
    d2 = pallas_pairwise_sqdist(x)                   # Pallas Gram + distance epilogue
    ks_eff = [k if (isinstance(k, int) and k < n) else n for k in ks]
    kmax = max(ks_eff)
    # TODO(synk): torch.sort / torch.topk (k-NN ranking) has no clean Pallas
    # equivalent on TPU; the top-k is done with lax.top_k in plain JAX.
    _, graph = lax.top_k(-d2, kmax)                  # (n, kmax) int32, ascending distance

    y = [x]                                          # forward_input=True
    out = x
    for (w, w2), k_eff in zip(params, ks_eff):
        layer_out = affinity_kernel_forward(out, w, w2, graph[:, :k_eff], k_eff)
        y.append(layer_out)
        out = jnp.concatenate(y, axis=-1)            # dense=True
    # TODO(synk): return_all=True branch (global max/average pooling feature)
    # and pooling='max' are not implemented (non-default config).
    return y[-1]                                     # return_all=False


# ---------------------------------------------------------------------------
# pure-JAX reference of the same PyTorch semantics (gather formulation)
# ---------------------------------------------------------------------------
def _ref_matmul(a, b):
    return jnp.matmul(a, b, precision=jax.lax.Precision.HIGHEST)


def affinity_net_reference(x, params, ks):
    n = x.shape[0]
    d = jnp.linalg.norm(x[None, :, :] - x[:, None, :], axis=-1)
    graph = jnp.argsort(d, axis=-1)
    y = [x]
    out = x
    for (w, w2), k in zip(params, ks):
        k_eff = k if (isinstance(k, int) and k < n) else n
        neigh = out[graph[:, :k_eff]]                # (n, k, in_dim)
        selfx = jnp.broadcast_to(out[:, None, :], neigh.shape)
        nm = jnp.concatenate([neigh, selfx], axis=-1)
        h = jnp.clip(_ref_matmul(nm, w.T), -1.0, 1.0)
        pooled = jnp.mean(h, axis=1)
        layer_out = _ref_matmul(jnp.concatenate([pooled, out], axis=-1), w2.T)
        y.append(layer_out)
        out = jnp.concatenate(y, axis=-1)
    return y[-1]


if __name__ == "__main__":
    key = jax.random.PRNGKey(0)
    k_x, k_p = jax.random.split(key)

    # small AffinityNet: AffinityNet(16, [32, 32], [32, 16], k=8)
    n_nodes, in_dim = 64, 16
    hidden_dims = [32, 32]
    out_dims = [32, 16]
    ks = [8, 8]

    x = jax.random.normal(k_x, (n_nodes, in_dim), dtype=jnp.float32)

    params = []
    layer_in = in_dim
    pkeys = jax.random.split(k_p, 2 * len(hidden_dims))
    for li, (hd, od) in enumerate(zip(hidden_dims, out_dims)):
        std1 = 1.0 / math.sqrt(2 * layer_in)
        w = jax.random.uniform(pkeys[2 * li], (hd, 2 * layer_in),
                               minval=-std1, maxval=std1, dtype=jnp.float32)
        std2 = 1.0 / math.sqrt(layer_in + hd)
        w2 = jax.random.uniform(pkeys[2 * li + 1], (od, layer_in + hd),
                                minval=-std2, maxval=std2, dtype=jnp.float32)
        params.append((w, w2))
        layer_in += od                               # dense + forward_input

    out = affinity_net_forward(x, params, ks)
    out = jax.block_until_ready(out)

    ref = affinity_net_reference(x, params, ks)
    assert out.shape == (n_nodes, out_dims[-1])
    max_err = float(jnp.max(jnp.abs(out - ref)))
    assert jnp.allclose(out, ref, atol=1e-3, rtol=1e-3), max_err

    print("KERNEL_OK")
</pallas_src>

<mosaic_0001>
module attributes {stable_mosaic.version = 11 : i64} {
  func.func @_dist_kernel(%arg0: i32, %arg1: memref<32x16xf32, #tpu.memory_space<vmem>>, %arg2: memref<16x64xf32, #tpu.memory_space<vmem>>, %arg3: memref<1x64xf32, #tpu.memory_space<vmem>>, %arg4: memref<32x64xf32, #tpu.memory_space<vmem>>) attributes {dimension_semantics = [#tpu.dimension_semantics<parallel>], iteration_bounds = array<i64: 2>, scalar_prefetch = 0 : i64, scratch_operands = 0 : i64, tpu.core_type = #tpu.core_type<tc>, window_params = [{transform_indices = @transform_0, window_bounds = array<i64: 32, 16>}, {pipeline_mode = #tpu.pipeline_mode<synchronous>, transform_indices = @transform_1, window_bounds = array<i64: 16, 64>}, {pipeline_mode = #tpu.pipeline_mode<synchronous>, transform_indices = @transform_2, window_bounds = array<i64: 1, 64>}, {transform_indices = @transform_3, window_bounds = array<i64: 32, 64>}]} {
    %c0 = arith.constant 0 : index
    %c0_0 = arith.constant 0 : index
    %0 = vector.load %arg1[%c0, %c0_0] : memref<32x16xf32, #tpu.memory_space<vmem>>, vector<32x16xf32>
    %c0_1 = arith.constant 0 : index
    %c0_2 = arith.constant 0 : index
    %1 = vector.load %arg2[%c0_1, %c0_2] : memref<16x64xf32, #tpu.memory_space<vmem>>, vector<16x64xf32>
    %cst = arith.constant dense<0.000000e+00> : vector<32x64xf32>
    %2 = tpu.matmul %0, %1, %cst {dimension_numbers = #tpu.dot_dimension_numbers<[1], [0], [0], [1], [0, 0, 1, 1], [], []>} : vector<32x16xf32>, vector<16x64xf32>, vector<32x64xf32> -> vector<32x64xf32>
    %3 = arith.mulf %0, %0 : vector<32x16xf32>
    %cst_3 = arith.constant dense<0.000000e+00> : vector<32xf32>
    %4 = vector.multi_reduction <add>, %3, %cst_3 [1] : vector<32x16xf32> to vector<32xf32>
    %5 = vector.shape_cast %4 : vector<32xf32> to vector<32x1xf32>
    %c0_4 = arith.constant 0 : index
    %c0_5 = arith.constant 0 : index
    %6 = vector.load %arg3[%c0_4, %c0_5] : memref<1x64xf32, #tpu.memory_space<vmem>>, vector<1x64xf32>
    %7 = vector.broadcast %5 : vector<32x1xf32> to vector<32x64xf32>
    %8 = vector.broadcast %6 : vector<1x64xf32> to vector<32x64xf32>
    %9 = arith.addf %7, %8 : vector<32x64xf32>
    %cst_6 = arith.constant 2.000000e+00 : f32
    %10 = vector.broadcast %cst_6 : f32 to vector<32x64xf32>
    %11 = arith.mulf %10, %2 : vector<32x64xf32>
    %12 = arith.subf %9, %11 : vector<32x64xf32>
    %c0_7 = arith.constant 0 : index
    %c0_8 = arith.constant 0 : index
    %13 = vector.load %arg4[%c0_7, %c0_8] : memref<32x64xf32, #tpu.memory_space<vmem>>, vector<32x64xf32>
    tpu.vector_store %arg4[%c0_7, %c0_8], %12 {strides = array<i32>} : memref<32x64xf32, #tpu.memory_space<vmem>>, vector<32x64xf32>,
    return
  }
  func.func @transform_0(%arg0: i32) -> (i32, i32) {
    %c0_i32 = arith.constant 0 : i32
    %c0_i32_0 = arith.constant 0 : i32
    return %arg0, %c0_i32 : i32, i32
  }
  func.func @transform_1(%arg0: i32) -> (i32, i32) {
    %c0_i32 = arith.constant 0 : i32
    %c0_i32_0 = arith.constant 0 : i32
    %c0_i32_1 = arith.constant 0 : i32
    return %c0_i32, %c0_i32_0 : i32, i32
  }
  func.func @transform_2(%arg0: i32) -> (i32, i32) {
    %c0_i32 = arith.constant 0 : i32
    %c0_i32_0 = arith.constant 0 : i32
    %c0_i32_1 = arith.constant 0 : i32
    return %c0_i32, %c0_i32_0 : i32, i32
  }
  func.func @transform_3(%arg0: i32) -> (i32, i32) {
    %c0_i32 = arith.constant 0 : i32
    %c0_i32_0 = arith.constant 0 : i32
    return %arg0, %c0_i32 : i32, i32
  }
}

</mosaic_0001>

<llo_original>
// kernel: tpu_custom_call.1
$region0: #{tpu_custom_call.1}
  #allocation0 [shape = 'u32[]', space=smem, size = 0x4, offset = 0x4, fixed_abs, tag = 'smem constant byte address 0x4 - core index']
  #allocation1 [shape = 'u32[144,128]{1,0:T(1,128)}', space=vmem, size = 0x12000, scoped, tag = 'internal scratch']
  %s0 = inlined_call_operand.vmem [shape: f32[64,16], index: 0, kind: input, shape index: {}]
  %s1 = inlined_call_operand.vmem [shape: f32[16,64], index: 1, kind: input, shape index: {}]
  %s2 = inlined_call_operand.vmem [shape: f32[1,64], index: 2, kind: input, shape index: {}]
  %s3 = inlined_call_operand.hbm [shape: f32[64,64], index: 3, kind: output, shape index: {}]
  %s4 = sld [smem:[#allocation0]]
  $region45: #{tpu_custom_call.1} parent=0
    _
  %s6 = ssub.s32 1, %s4
  %s7 = scalar_select 0, %s6, %s4
  $region1: #{tpu_custom_call.1} parent=0
    #allocation2 [shape = 'u8[32768]{0}', space=vmem, size = 0x8000, scoped, tag = 'output window, operand 0']
    #allocation3 [shape = 's32[2]{0}', space=sflag, size = 0x8, scoped, tag = 'scoped memory for tpu_custom_call.1']
    %8 = vsyncpa [#allocation3], 0
    %s9 = scalar_lea.sflag [#allocation3], 1
    %10 = vsyncpa %s9, 0
    loop: start=0, step=1, limit=4
    $region2: #{tpu_custom_call.1} parent=1 // loop_pre_header
      _
    $region3: #{tpu_custom_call.1} parent=1 // loop_header
      %s12 = sphi 0, %s16
      %p13 = scmp.ge.s32.totalorder %s12, 4
      %s22 = sphi 0, %s24
      %s25 = sphi 0, %s22
      %s26 = sphi 0, %s25
      %s42 = sphi 0, %s26
      %s46 = sphi 0, %s46
      %s48 = sphi 0, %s46
      %s49 = sphi 0, %s48
      %s63 = sphi 0, %s49
      %s67 = sphi 0, %s67
      %s69 = sphi 0, %s67
      %s70 = sphi 0, %s69
      %s84 = sphi 0, %s70
      %s90 = sphi 0, %s92
      %s93 = sphi 0, %s90
      %s94 = sphi 0, %s93
      %s110 = sphi 0, %s94
    $region4: #{tpu_custom_call.1} parent=1 // loop_header_branch
      %15 = sbr.rel (%p13) target = $region8
    $region5: #{tpu_custom_call.1} parent=1 // loop_body
      %s17 = ssub.s32 %s12, 1
      %s18 = ssub.s32 %s12, 2
      %s19 = sadd.s32 %s12, 1
      %s20 = ssub.s32 %s12, %s19
      %p21 = scmp.eq.s32.totalorder %s20, 0
      %s23 = sadd.s32 %s22, 1
      %s24 = scalar_select %p21, %s22, %s23
      %p27 = pneg %p21
      %p28 = scmp.eq.s32.totalorder %s12, 1
      %p29 = por %p27, %p28
      %p30 = scmp.ne.s32.totalorder %s22, %s25
      %p31 = scmp.eq.s32.totalorder %s12, 0
      %p32 = por %p30, %p31
      %p33 = scmp.ne.s32.totalorder %s22, %s25
      %p34 = scmp.eq.s32.totalorder %s17, 1
      %p35 = por %p33, %p34
      %p36 = scmp.ne.s32.totalorder %s25, %s26
      %p37 = scmp.eq.s32.totalorder %s17, 0
      %p38 = por %p36, %p37
      %p39 = scmp.ne.s32.totalorder %s25, %s26
      %p40 = scmp.eq.s32.totalorder %s18, 1
      %p41 = por %p39, %p40
      %p43 = scmp.ne.s32.totalorder %s26, %s42
      %p44 = scmp.eq.s32.totalorder %s18, 0
      %p45 = por %p43, %p44
      %s47 = sadd.s32 %s46, 1
      %p50 = scmp.eq.s32.totalorder %s12, 1
      %p51 = scmp.ne.s32.totalorder %s46, %s48
      %p52 = scmp.eq.s32.totalorder %s12, 0
      %p53 = por %p51, %p52
      %p54 = scmp.ne.s32.totalorder %s46, %s48
      %p55 = scmp.eq.s32.totalorder %s17, 1
      %p56 = por %p54, %p55
      %p57 = scmp.ne.s32.totalorder %s48, %s49
      %p58 = scmp.eq.s32.totalorder %s17, 0
      %p59 = por %p57, %p58
      %p60 = scmp.ne.s32.totalorder %s48, %s49
      %p61 = scmp.eq.s32.totalorder %s18, 1
      %p62 = por %p60, %p61
      %p64 = scmp.ne.s32.totalorder %s49, %s63
      %p65 = scmp.eq.s32.totalorder %s18, 0
      %p66 = por %p64, %p65
      %s68 = sadd.s32 %s67, 1
      %p71 = scmp.eq.s32.totalorder %s12, 1
      %p72 = scmp.ne.s32.totalorder %s67, %s69
      %p73 = scmp.eq.s32.totalorder %s12, 0
      %p74 = por %p72, %p73
      %p75 = scmp.ne.s32.totalorder %s67, %s69
      %p76 = scmp.eq.s32.totalorder %s17, 1
      %p77 = por %p75, %p76
      %p78 = scmp.ne.s32.totalorder %s69, %s70
      %p79 = scmp.eq.s32.totalorder %s17, 0
      %p80 = por %p78, %p79
      %p81 = scmp.ne.s32.totalorder %s69, %s70
      %p82 = scmp.eq.s32.totalorder %s18, 1
      %p83 = por %p81, %p82
      %p85 = scmp.ne.s32.totalorder %s70, %s84
      %p86 = scmp.eq.s32.totalorder %s18, 0
      %p87 = por %p85, %p86
      %s88 = ssub.s32 %s12, %s19
      %p89 = scmp.eq.s32.totalorder %s88, 0
      %s91 = sadd.s32 %s90, 1
      %s92 = scalar_select %p89, %s90, %s91
      %p95 = pneg %p89
      %p96 = scmp.eq.s32.totalorder %s12, 1
      %p97 = por %p95, %p96
      %p98 = scmp.ne.s32.totalorder %s90, %s93
      %p99 = scmp.eq.s32.totalorder %s12, 0
      %p100 = por %p98, %p99
      %p101 = scmp.ne.s32.totalorder %s90, %s93
      %p102 = scmp.eq.s32.totalorder %s17, 1
      %p103 = por %p101, %p102
      %p104 = scmp.ne.s32.totalorder %s93, %s94
      %p105 = scmp.eq.s32.totalorder %s17, 0
      %p106 = por %p104, %p105
      %p107 = scmp.ne.s32.totalorder %s93, %s94
      %p108 = scmp.eq.s32.totalorder %s18, 1
      %p109 = por %p107, %p108
      %p111 = scmp.ne.s32.totalorder %s94, %s110
      %p112 = scmp.eq.s32.totalorder %s18, 0
      %p113 = por %p111, %p112
      %p114 = scmp.le.s32.totalorder 1, %s12
      %p115 = scmp.lt.s32.totalorder %s12, 3
      %p116 = pnand %p114, %p115
      %p117 = pneg %p116
      // Predicated region
      $region9: #{tpu_custom_call.1} parent=5 // pred_check
        _
      $region10: #{tpu_custom_call.1} parent=5 // pred_check_branch
        %119 = sbr.rel (%p116) target = $region12
      $region11: #{tpu_custom_call.1} parent=5 // pred_region
        %s120 = ssub.s32 %s12, 1
        // Predicated region
        $region13: #{tpu_custom_call.1} parent=11 // pred_check
          %p121 = pneg %p59
        $region14: #{tpu_custom_call.1} parent=11 // pred_check_branch
          %123 = sbr.rel (%p121) target = $region16
        $region15: #{tpu_custom_call.1} parent=11 // pred_region
          _
        $region16: #{tpu_custom_call.1} parent=11 // pred_fallthru
          _
        // Predicated region
        $region17: #{tpu_custom_call.1} parent=11 // pred_check
          %p124 = pneg %p80
        $region18: #{tpu_custom_call.1} parent=11 // pred_check_branch
          %126 = sbr.rel (%p124) target = $region20
        $region19: #{tpu_custom_call.1} parent=11 // pred_region
          _
        $region20: #{tpu_custom_call.1} parent=11 // pred_fallthru
          _
      $region12: #{tpu_custom_call.1} parent=5 // pred_fallthru
        _
      %p127 = scmp.lt.s32.totalorder %s12, 2
      // Predicated region
      $region21: #{tpu_custom_call.1} parent=5 // pred_check
        %p128 = pneg %p127
      $region22: #{tpu_custom_call.1} parent=5 // pred_check_branch
        %130 = sbr.rel (%p128) target = $region24
      $region23: #{tpu_custom_call.1} parent=5 // pred_region
        // Predicated region
        $region25: #{tpu_custom_call.1} parent=23 // pred_check
          %p131 = pneg %p32
        $region26: #{tpu_custom_call.1} parent=23 // pred_check_branch
          %133 = sbr.rel (%p131) target = $region28
        $region27: #{tpu_custom_call.1} parent=23 // pred_region
          %s134 = smul.u32 4, %s12
          %p135 = scmp.lt.s32.totalorder %s134, 7
          %s136 = scalar_select %p135, %s134, 7
          %s137 = smul.addr %s136, 8
          %s138 = scalar_lea.vmem %s0, %s137
          %s139 = smul.u32 4, %s12
        $region28: #{tpu_custom_call.1} parent=23 // pred_fallthru
          _
      $region24: #{tpu_custom_call.1} parent=5 // pred_fallthru
        _
      %p140 = scmp.le.s32.totalorder 1, %s12
      %p141 = scmp.lt.s32.totalorder %s12, 3
      %p142 = pnand %p140, %p141
      %p143 = pneg %p142
      // Predicated region
      $region29: #{tpu_custom_call.1} parent=5 // pred_check
        _
      $region30: #{tpu_custom_call.1} parent=5 // pred_check_branch
        %145 = sbr.rel (%p142) target = $region32
      $region31: #{tpu_custom_call.1} parent=5 // pred_region
        %s146 = ssub.s32 %s12, 1
        %s147 = smul.u32 4, %s17
        %p148 = scmp.lt.s32.totalorder %s147, 7
        %s149 = scalar_select %p148, %s147, 7
        %s150 = smul.addr %s149, 8
        %s151 = scalar_lea.vmem %s0, %s150
        %p152 = pneg %p38
        %p153 = pneg %p35
        %p154 = pneg %p59
        %p155 = pneg %p56
        %p156 = pneg %p80
        %p157 = pneg %p77
        %p158 = pneg %p106
        %p159 = pneg %p103
        %s160 = sand.u32 %s93, 1
        %s161 = scalar_lea.sflag [#allocation3], %s160
        %s162 = sand.u32 %s93, 1
        %s163 = smul.addr %s162, 32
        %s164 = scalar_lea.vmem [#allocation2], %s163
        %s165 = smul.u32 4, %s17
        %p166 = scmp.lt.s32.totalorder %s165, 7
        %s167 = scalar_select %p166, %s165, 7
        %s168 = smul.addr %s167, 8
        %s169 = scalar_lea.vmem %s0, %s168
        %s170 = smul.u32 4, %s17
        %s171 = smul.u32 4, %s17
        %v172 = vld [vmem:[%s169] sm:$0xff]
        %v173 = vld [vmem:[%s169 + $0x8] sm:$0xff]
        %v174 = vld [vmem:[%s169 + $0x10] sm:$0xff]
        %v175 = vld [vmem:[%s169 + $0x18] sm:$0xff]
        %v176 = vld [vmem:[%s1] sm:$0xff]
        %v177 = vld [vmem:[%s1 + $0x8] sm:$0xff]
        %vm178 = vcmask 130048
        %v180 = vsel %vm178, %v172, 0
        %v183 = vsel %vm178, %v173, 0
        %v186 = vsel %vm178, %v174, 0
        %v189 = vsel %vm178, %v175, 0
        %191 = vmatprep.subr.mxu0 0.0
        %192 = vmatpush1.msra.mxu0 %v176
        %193 = vmatprep.subr.mxu0 0.0
        %194 = vmatpush1.msra.mxu0 %v177
        %195 = vmatprep.subr.mxu0 0.0
        %196 = vmatpush1.msra.mxu0 0.0
        %197 = vmatprep.subr.mxu0 0.0
        %198 = vmatpush1.msra.mxu0 0.0
        %199 = vmatprep.subr.mxu0 0.0
        %200 = vmatpush1.msra.mxu0 0.0
        %201 = vmatprep.subr.mxu0 0.0
        %202 = vmatpush1.msra.mxu0 0.0
        %203 = vmatprep.subr.mxu0 0.0
        %204 = vmatpush1.msra.mxu0 0.0
        %205 = vmatprep.subr.mxu0 0.0
        %206 = vmatpush1.msra.mxu0 0.0
        %207 = vmatprep.subr.mxu0 0.0
        %208 = vmatpush1.msra.mxu0 0.0
        %209 = vmatprep.subr.mxu0 0.0
        %210 = vmatpush1.msra.mxu0 0.0
        %211 = vmatprep.subr.mxu0 0.0
        %212 = vmatpush1.msra.mxu0 0.0
        %213 = vmatprep.subr.mxu0 0.0
        %214 = vmatpush1.msra.mxu0 0.0
        %215 = vmatprep.subr.mxu0 0.0
        %216 = vmatpush1.msra.mxu0 0.0
        %217 = vmatprep.subr.mxu0 0.0
        %218 = vmatpush1.msra.mxu0 0.0
        %219 = vmatprep.subr.mxu0 0.0
        %220 = vmatpush1.msra.mxu0 0.0
        %221 = vmatprep.subr.mxu0 0.0
        %222 = vmatpush1.msra.mxu0 0.0
        %223 = vmatprep.subr.mxu0 0.0
        %224 = vmatpush1.msra.mxu0 0.0
        %225 = vmatprep.subr.mxu0 0.0
        %226 = vmatpush1.msra.mxu0 0.0
        %227 = vmatprep.subr.mxu0 0.0
        %228 = vmatpush1.msra.mxu0 0.0
        %229 = vmatprep.subr.mxu0 0.0
        %230 = vmatpush1.msra.mxu0 0.0
        %231 = vmatprep.subr.mxu0 0.0
        %232 = vmatpush1.msra.mxu0 0.0
        %233 = vmatprep.subr.mxu0 0.0
        %234 = vmatpush1.msra.mxu0 0.0
        %235 = vmatprep.subr.mxu0 0.0
        %236 = vmatpush1.msra.mxu0 0.0
        %237 = vmatprep.subr.mxu0 0.0
        %238 = vmatpush1.msra.mxu0 0.0
        %239 = vmatprep.subr.mxu0 0.0
        %240 = vmatpush1.msra.mxu0 0.0
        %241 = vmatprep.subr.mxu0 0.0
        %242 = vmatpush1.msra.mxu0 0.0
        %243 = vmatprep.subr.mxu0 0.0
        %244 = vmatpush1.msra.mxu0 0.0
        %245 = vmatprep.subr.mxu0 0.0
        %246 = vmatpush1.msra.mxu0 0.0
        %247 = vmatprep.subr.mxu0 0.0
        %248 = vmatpush1.msra.mxu0 0.0
        %249 = vmatprep.subr.mxu0 0.0
        %250 = vmatpush1.msra.mxu0 0.0
        %251 = vmatprep.subr.mxu0 0.0
        %252 = vmatpush1.msra.mxu0 0.0
        %253 = vmatprep.subr.mxu0 0.0
        %254 = vmatpush1.msra.mxu0 0.0
        %255 = vmatprep.mubr.f32.mxu0 0.0
        %256 = vmatmul.mubr.f32.gmra.mrb[0].mxu0 %v180
        %v257 = vpop.f32.mrb[0].mxu0
        %v258 = vadd.f32 0.0, %v257
        %v259 = vpop.f32.mrb[0].mxu0
        %260 = vmatprep.mubr.f32.mxu0 0.0
        %261 = vmatmul.mubr.f32.gmra.mrb[0].mxu0 %v183
        %v262 = vpop.f32.mrb[0].mxu0
        %v263 = vadd.f32 0.0, %v262
        %v264 = vpop.f32.mrb[0].mxu0
        %265 = vmatprep.mubr.f32.mxu0 0.0
        %266 = vmatmul.mubr.f32.gmra.mrb[0].mxu0 %v186
        %v267 = vpop.f32.mrb[0].mxu0
        %v268 = vadd.f32 0.0, %v267
        %v269 = vpop.f32.mrb[0].mxu0
        %270 = vmatprep.mubr.f32.mxu0 0.0
        %271 = vmatmul.mubr.f32.gmra.mrb[0].mxu0 %v189
        %v272 = vpop.f32.mrb[0].mxu0
        %v273 = vadd.f32 0.0, %v272
        %v274 = vpop.f32.mrb[0].mxu0
        %275 = vdwg.mxu0
        %v276 = vmul.f32 %v172, %v172
        %v277 = vmul.f32 %v173, %v173
        %v278 = vmul.f32 %v174, %v174
        %v279 = vmul.f32 %v175, %v175
        %v280 = vsel %vm178, %v276, 0.0
        %281 = vadd.xlane.f32.xlu0 %v280
        %v282 = vpop.xlane.xlu0 %281
        %v283 = vsel %vm178, %v277, 0.0
        %284 = vadd.xlane.f32.xlu0 %v283
        %v285 = vpop.xlane.xlu0 %284
        %v286 = vsel %vm178, %v278, 0.0
        %287 = vadd.xlane.f32.xlu0 %v286
        %v288 = vpop.xlane.xlu0 %287
        %v289 = vsel %vm178, %v279, 0.0
        %290 = vadd.xlane.f32.xlu0 %v289
        %v291 = vpop.xlane.xlu0 %290
        %v292 = vld [vmem:[%s2] sm:$0x1]
        %v294 = vlaneseq
        %v295 = vshrl.u32 %v294, 7
        %v296 = vsub.s32 0, %v295
        %v297 = vrot.slane %v292, %v296
        %v299 = vadd.f32 %v282, %v297
        %v300 = vadd.f32 %v285, %v297
        %v301 = vadd.f32 %v288, %v297
        %v302 = vadd.f32 %v291, %v297
        %v303 = vmul.f32 %v258, 2.0
        %v304 = vmul.f32 %v263, 2.0
        %v305 = vmul.f32 %v268, 2.0
        %v306 = vmul.f32 %v273, 2.0
        %v307 = vsub.f32 %v299, %v303
        %v308 = vsub.f32 %v300, %v304
        %v309 = vsub.f32 %v301, %v305
        %v310 = vsub.f32 %v302, %v306
        %vm311 = vcmask 523264
        %312 = vst.msk [vmem:[%s164] sm:$0xff] %vm311, %v307
        %313 = vst.msk [vmem:[%s164 + $0x8] sm:$0xff] %vm311, %v308
        %314 = vst.msk [vmem:[%s164 + $0x10] sm:$0xff] %vm311, %v309
        %315 = vst.msk [vmem:[%s164 + $0x18] sm:$0xff] %vm311, %v310
        %s316 = sand.u32 %s93, 1
        %s317 = scalar_lea.sflag [#allocation3], %s316
        %s318 = sand.u32 %s93, 1
        %s319 = smul.addr %s318, 32
        %s320 = scalar_lea.vmem [#allocation2], %s319
        // Predicated region
        $region33: #{tpu_custom_call.1} parent=31 // pred_check
          %p321 = pneg %p103
        $region34: #{tpu_custom_call.1} parent=31 // pred_check_branch
          %323 = sbr.rel (%p321) target = $region36
        $region35: #{tpu_custom_call.1} parent=31 // pred_region
          %s324 = smul.u32 4, %s17
          %s326 = ssub.s32 512, 512
          %327 = vsyncadd %s317, %s326
          %s328 = smul.addr %s324, 128
          %s329 = scalar_lea.hbm %s3, %s328
          %s330 = sshll.u32 %s320, 4
          %s331 = int_to_ptr.vmem [resolvable:$true] %s330
          %336 = dma.vmem_to_hbm [thread:$0]  %s331, 512, %s329, %s317, 128, 128, 8
        $region36: #{tpu_custom_call.1} parent=31 // pred_fallthru
          _
      $region32: #{tpu_custom_call.1} parent=5 // pred_fallthru
        _
      %p337 = scmp.le.s32.totalorder 2, %s12
      // Predicated region
      $region37: #{tpu_custom_call.1} parent=5 // pred_check
        %p338 = pneg %p337
      $region38: #{tpu_custom_call.1} parent=5 // pred_check_branch
        %340 = sbr.rel (%p338) target = $region40
      $region39: #{tpu_custom_call.1} parent=5 // pred_region
        %s341 = ssub.s32 %s12, 2
        // Predicated region
        $region41: #{tpu_custom_call.1} parent=39 // pred_check
          %p342 = pneg %p109
        $region42: #{tpu_custom_call.1} parent=39 // pred_check_branch
          %344 = sbr.rel (%p342) target = $region44
        $region43: #{tpu_custom_call.1} parent=39 // pred_region
          %s345 = sand.u32 %s94, 1
          %s346 = scalar_lea.sflag [#allocation3], %s345
          %s347 = sand.u32 %s94, 1
          %s348 = smul.addr %s347, 32
          %s349 = scalar_lea.vmem [#allocation2], %s348
          %350 = dma.done %s346, 512
        $region44: #{tpu_custom_call.1} parent=39 // pred_fallthru
          _
      $region40: #{tpu_custom_call.1} parent=5 // pred_fallthru
        _
    $region6: #{tpu_custom_call.1} parent=1 // loop_footer
      %s16 = sadd.s32 1, %s12
    $region7: #{tpu_custom_call.1} parent=1 // loop_footer_branch
      %11 = sbr.rel target = $region3
    $region8: #{tpu_custom_call.1} parent=1 // loop_exit
      _
    %351 = vsyncpa [#allocation3], 1
    %s352 = scalar_lea.sflag [#allocation3], 1
    %353 = vsyncpa %s352, 1

</llo_original>
